<compile_context>
chip_gen: v7x
topology: tpu7x:2x2x1
jax: 0.10.0
libtpu: 0.0.40
codegen_flags: <defaults>
</compile_context>

<pallas_src>
import functools

import jax
import jax.numpy as jnp
from jax.experimental import pallas as pl
from jax.experimental.pallas import tpu as pltpu


def _cos_accuracy_kernel(a_ref, b_ref, c_ref, d_ref, out_ref, *, true_d):
    # a = init_img_vec, b = next_img_vec, c = init_unclip, d = pred_unclip.
    # Refs are (Bp, Dp) in their native dtype, fully resident in VMEM;
    # rows >= B and columns >= true_d are zero padding.

    def l2_normalize_rows(x_ref):
        # F.normalize(x, dim=-1): x / max(||x||_2, 1e-12) per row.
        # rsqrt of the clamped squared norm == 1 / max(norm, 1e-12) and runs
        # on the EUP (free slot) instead of a VPU divide.  Zero (padded) rows
        # stay zero; zero (padded) columns do not change the norm.
        x = x_ref[...].astype(jnp.float32)
        sq = jnp.sum(x * x, axis=-1, keepdims=True)
        inv = jax.lax.rsqrt(jnp.maximum(sq, 1e-24))
        return x * inv

    a = l2_normalize_rows(a_ref)
    b = l2_normalize_rows(b_ref)
    c = l2_normalize_rows(c_ref)
    d = l2_normalize_rows(d_ref)

    def cosine_embedding_loss_mean(x, y):
        # CosineEmbeddingLoss(target=1) applied to x.T / y.T: for each feature
        # column, cosine across the batch axis; loss = mean_d (1 - cos_d).
        # Padded batch rows are zero -> contribute nothing to the column
        # reductions.  Padded feature columns have dot == 0 -> cos == 0, so
        # the sum over all Dp lanes equals the sum over the true D columns.
        dot = jnp.sum(x * y, axis=0, keepdims=True)    # (1, Dp)
        nx2 = jnp.sum(x * x, axis=0, keepdims=True)    # (1, Dp)
        ny2 = jnp.sum(y * y, axis=0, keepdims=True)    # (1, Dp)
        cos = dot * jax.lax.rsqrt((nx2 + 1e-12) * (ny2 + 1e-12))
        return 1.0 - jnp.sum(cos) / jnp.float32(true_d)

    cos_init = cosine_embedding_loss_mean(a, c)
    cos_pred = cosine_embedding_loss_mean(b, d)

    out_ref[0, 0] = 2.0 * cos_init * cos_pred / (cos_init + cos_pred + 1e-8)


def cos_accuracy(init_img_vec, next_img_vec, init_unclip, pred_unclip):
    """Pallas implementation of CosAccuracy.forward.

    Inputs: (B, 1, D) arrays (any float dtype). Returns a float32 scalar.
    """
    # Glue: squeeze the singleton dim; keep the NATIVE dtype on the wire
    # (the f32 cast happens inside the kernel).
    a = jnp.squeeze(init_img_vec, axis=1)
    b = jnp.squeeze(next_img_vec, axis=1)
    c = jnp.squeeze(init_unclip, axis=1)
    d = jnp.squeeze(pred_unclip, axis=1)

    B, D = a.shape
    b_pad = max(8, ((B + 7) // 8) * 8)          # sublane-align the batch axis
    d_pad = max(128, ((D + 127) // 128) * 128)  # lane-align the feature axis

    def pad(x):
        if (b_pad, d_pad) == (B, D):
            return x
        return jnp.pad(x, ((0, b_pad - B), (0, d_pad - D)))

    a, b, c, d = pad(a), pad(b), pad(c), pad(d)

    vmem_spec = pl.BlockSpec(memory_space=pltpu.MemorySpace.VMEM)
    kernel = functools.partial(_cos_accuracy_kernel, true_d=D)
    out = pl.pallas_call(
        kernel,
        out_shape=jax.ShapeDtypeStruct((1, 1), jnp.float32),
        in_specs=[vmem_spec, vmem_spec, vmem_spec, vmem_spec],
        # Scalar result -> SMEM (avoids a masked store into a padded VMEM tile).
        out_specs=pl.BlockSpec(memory_space=pltpu.MemorySpace.SMEM),
        compiler_params=pltpu.CompilerParams(vmem_limit_bytes=32 * 1024 * 1024),
    )(a, b, c, d)
    return out[0, 0]


if __name__ == "__main__":
    key = jax.random.PRNGKey(0)
    k1, k2, k3, k4 = jax.random.split(key, 4)

    B, D = 2, 32  # small shapes consistent with the module's (B, 1, D) inputs
    init_img_vec = jax.random.normal(k1, (B, 1, D), dtype=jnp.float32)
    next_img_vec = jax.random.normal(k2, (B, 1, D), dtype=jnp.float32)
    init_unclip = jax.random.normal(k3, (B, 1, D), dtype=jnp.float32)
    pred_unclip = jax.random.normal(k4, (B, 1, D), dtype=jnp.float32)

    result = cos_accuracy(init_img_vec, next_img_vec, init_unclip, pred_unclip)
    jax.block_until_ready(result)
    print("KERNEL_OK")
</pallas_src>

<mosaic_0001>
module attributes {stable_mosaic.version = 11 : i64} {
  func.func @_cos_accuracy_kernel(%arg0: memref<8x128xf32, #tpu.memory_space<vmem>>, %arg1: memref<8x128xf32, #tpu.memory_space<vmem>>, %arg2: memref<8x128xf32, #tpu.memory_space<vmem>>, %arg3: memref<8x128xf32, #tpu.memory_space<vmem>>, %arg4: memref<1x1xf32, #tpu.memory_space<smem>>) attributes {dimension_semantics = [], scalar_prefetch = 0 : i64, scratch_operands = 0 : i64, tpu.core_type = #tpu.core_type<tc>} {
    %c0 = arith.constant 0 : index
    %c0_0 = arith.constant 0 : index
    %0 = vector.load %arg0[%c0, %c0_0] : memref<8x128xf32, #tpu.memory_space<vmem>>, vector<8x128xf32>
    %1 = arith.mulf %0, %0 : vector<8x128xf32>
    %cst = arith.constant dense<0.000000e+00> : vector<8xf32>
    %2 = vector.multi_reduction <add>, %1, %cst [1] : vector<8x128xf32> to vector<8xf32>
    %3 = vector.shape_cast %2 : vector<8xf32> to vector<8x1xf32>
    %cst_1 = arith.constant 1.000000e-24 : f32
    %4 = vector.broadcast %cst_1 : f32 to vector<8x1xf32>
    %5 = arith.maximumf %3, %4 : vector<8x1xf32>
    %6 = math.rsqrt %5 : vector<8x1xf32>
    %7 = vector.broadcast %6 : vector<8x1xf32> to vector<8x128xf32>
    %8 = arith.mulf %0, %7 : vector<8x128xf32>
    %c0_2 = arith.constant 0 : index
    %c0_3 = arith.constant 0 : index
    %9 = vector.load %arg1[%c0_2, %c0_3] : memref<8x128xf32, #tpu.memory_space<vmem>>, vector<8x128xf32>
    %10 = arith.mulf %9, %9 : vector<8x128xf32>
    %cst_4 = arith.constant dense<0.000000e+00> : vector<8xf32>
    %11 = vector.multi_reduction <add>, %10, %cst_4 [1] : vector<8x128xf32> to vector<8xf32>
    %12 = vector.shape_cast %11 : vector<8xf32> to vector<8x1xf32>
    %cst_5 = arith.constant 1.000000e-24 : f32
    %13 = vector.broadcast %cst_5 : f32 to vector<8x1xf32>
    %14 = arith.maximumf %12, %13 : vector<8x1xf32>
    %15 = math.rsqrt %14 : vector<8x1xf32>
    %16 = vector.broadcast %15 : vector<8x1xf32> to vector<8x128xf32>
    %17 = arith.mulf %9, %16 : vector<8x128xf32>
    %c0_6 = arith.constant 0 : index
    %c0_7 = arith.constant 0 : index
    %18 = vector.load %arg2[%c0_6, %c0_7] : memref<8x128xf32, #tpu.memory_space<vmem>>, vector<8x128xf32>
    %19 = arith.mulf %18, %18 : vector<8x128xf32>
    %cst_8 = arith.constant dense<0.000000e+00> : vector<8xf32>
    %20 = vector.multi_reduction <add>, %19, %cst_8 [1] : vector<8x128xf32> to vector<8xf32>
    %21 = vector.shape_cast %20 : vector<8xf32> to vector<8x1xf32>
    %cst_9 = arith.constant 1.000000e-24 : f32
    %22 = vector.broadcast %cst_9 : f32 to vector<8x1xf32>
    %23 = arith.maximumf %21, %22 : vector<8x1xf32>
    %24 = math.rsqrt %23 : vector<8x1xf32>
    %25 = vector.broadcast %24 : vector<8x1xf32> to vector<8x128xf32>
    %26 = arith.mulf %18, %25 : vector<8x128xf32>
    %c0_10 = arith.constant 0 : index
    %c0_11 = arith.constant 0 : index
    %27 = vector.load %arg3[%c0_10, %c0_11] : memref<8x128xf32, #tpu.memory_space<vmem>>, vector<8x128xf32>
    %28 = arith.mulf %27, %27 : vector<8x128xf32>
    %cst_12 = arith.constant dense<0.000000e+00> : vector<8xf32>
    %29 = vector.multi_reduction <add>, %28, %cst_12 [1] : vector<8x128xf32> to vector<8xf32>
    %30 = vector.shape_cast %29 : vector<8xf32> to vector<8x1xf32>
    %cst_13 = arith.constant 1.000000e-24 : f32
    %31 = vector.broadcast %cst_13 : f32 to vector<8x1xf32>
    %32 = arith.maximumf %30, %31 : vector<8x1xf32>
    %33 = math.rsqrt %32 : vector<8x1xf32>
    %34 = vector.broadcast %33 : vector<8x1xf32> to vector<8x128xf32>
    %35 = arith.mulf %27, %34 : vector<8x128xf32>
    %36 = arith.mulf %8, %26 : vector<8x128xf32>
    %cst_14 = arith.constant dense<0.000000e+00> : vector<128xf32>
    %37 = vector.multi_reduction <add>, %36, %cst_14 [0] : vector<8x128xf32> to vector<128xf32>
    %38 = vector.shape_cast %37 : vector<128xf32> to vector<1x128xf32>
    %39 = arith.mulf %8, %8 : vector<8x128xf32>
    %cst_15 = arith.constant dense<0.000000e+00> : vector<128xf32>
    %40 = vector.multi_reduction <add>, %39, %cst_15 [0] : vector<8x128xf32> to vector<128xf32>
    %41 = vector.shape_cast %40 : vector<128xf32> to vector<1x128xf32>
    %42 = arith.mulf %26, %26 : vector<8x128xf32>
    %cst_16 = arith.constant dense<0.000000e+00> : vector<128xf32>
    %43 = vector.multi_reduction <add>, %42, %cst_16 [0] : vector<8x128xf32> to vector<128xf32>
    %44 = vector.shape_cast %43 : vector<128xf32> to vector<1x128xf32>
    %cst_17 = arith.constant 9.99999996E-13 : f32
    %45 = vector.broadcast %cst_17 : f32 to vector<1x128xf32>
    %46 = arith.addf %41, %45 : vector<1x128xf32>
    %cst_18 = arith.constant 9.99999996E-13 : f32
    %47 = vector.broadcast %cst_18 : f32 to vector<1x128xf32>
    %48 = arith.addf %44, %47 : vector<1x128xf32>
    %49 = arith.mulf %46, %48 : vector<1x128xf32>
    %50 = math.rsqrt %49 : vector<1x128xf32>
    %51 = arith.mulf %38, %50 : vector<1x128xf32>
    %52 = vector.shape_cast %51 : vector<1x128xf32> to vector<1x1x128xf32>
    %cst_19 = arith.constant dense<0.000000e+00> : vector<1xf32>
    %53 = vector.multi_reduction <add>, %52, %cst_19 [1, 2] : vector<1x1x128xf32> to vector<1xf32>
    %54 = vector.shape_cast %53 : vector<1xf32> to vector<1x1x1xf32>
    %55 = vector.extract %54[0, 0, 0] : f32 from vector<1x1x1xf32>
    %cst_20 = arith.constant 3.200000e+01 : f32
    %56 = arith.divf %55, %cst_20 : f32
    %cst_21 = arith.constant 1.000000e+00 : f32
    %57 = arith.subf %cst_21, %56 : f32
    %58 = arith.mulf %17, %35 : vector<8x128xf32>
    %cst_22 = arith.constant dense<0.000000e+00> : vector<128xf32>
    %59 = vector.multi_reduction <add>, %58, %cst_22 [0] : vector<8x128xf32> to vector<128xf32>
    %60 = vector.shape_cast %59 : vector<128xf32> to vector<1x128xf32>
    %61 = arith.mulf %17, %17 : vector<8x128xf32>
    %cst_23 = arith.constant dense<0.000000e+00> : vector<128xf32>
    %62 = vector.multi_reduction <add>, %61, %cst_23 [0] : vector<8x128xf32> to vector<128xf32>
    %63 = vector.shape_cast %62 : vector<128xf32> to vector<1x128xf32>
    %64 = arith.mulf %35, %35 : vector<8x128xf32>
    %cst_24 = arith.constant dense<0.000000e+00> : vector<128xf32>
    %65 = vector.multi_reduction <add>, %64, %cst_24 [0] : vector<8x128xf32> to vector<128xf32>
    %66 = vector.shape_cast %65 : vector<128xf32> to vector<1x128xf32>
    %cst_25 = arith.constant 9.99999996E-13 : f32
    %67 = vector.broadcast %cst_25 : f32 to vector<1x128xf32>
    %68 = arith.addf %63, %67 : vector<1x128xf32>
    %cst_26 = arith.constant 9.99999996E-13 : f32
    %69 = vector.broadcast %cst_26 : f32 to vector<1x128xf32>
    %70 = arith.addf %66, %69 : vector<1x128xf32>
    %71 = arith.mulf %68, %70 : vector<1x128xf32>
    %72 = math.rsqrt %71 : vector<1x128xf32>
    %73 = arith.mulf %60, %72 : vector<1x128xf32>
    %74 = vector.shape_cast %73 : vector<1x128xf32> to vector<1x1x128xf32>
    %cst_27 = arith.constant dense<0.000000e+00> : vector<1xf32>
    %75 = vector.multi_reduction <add>, %74, %cst_27 [1, 2] : vector<1x1x128xf32> to vector<1xf32>
    %76 = vector.shape_cast %75 : vector<1xf32> to vector<1x1x1xf32>
    %77 = vector.extract %76[0, 0, 0] : f32 from vector<1x1x1xf32>
    %cst_28 = arith.constant 3.200000e+01 : f32
    %78 = arith.divf %77, %cst_28 : f32
    %cst_29 = arith.constant 1.000000e+00 : f32
    %79 = arith.subf %cst_29, %78 : f32
    %cst_30 = arith.constant 2.000000e+00 : f32
    %80 = arith.mulf %cst_30, %57 : f32
    %81 = arith.mulf %80, %79 : f32
    %82 = arith.addf %57, %79 : f32
    %cst_31 = arith.constant 9.99999993E-9 : f32
    %83 = arith.addf %82, %cst_31 : f32
    %84 = arith.divf %81, %83 : f32
    %c0_32 = arith.constant 0 : index
    %c0_33 = arith.constant 0 : index
    %85 = memref.load %arg4[%c0_32, %c0_33] : memref<1x1xf32, #tpu.memory_space<smem>>
    memref.store %84, %arg4[%c0_32, %c0_33] : memref<1x1xf32, #tpu.memory_space<smem>>
    return
  }
}

</mosaic_0001>

<llo_original>
// kernel: tpu_custom_call.1
$region0: #{tpu_custom_call.1}
  #allocation0 [shape = 'u32[]', space=smem, size = 0x4, offset = 0x4, fixed_abs, tag = 'smem constant byte address 0x4 - core index']
  #allocation1 [shape = 'u32[144,128]{1,0:T(1,128)}', space=vmem, size = 0x12000, scoped, tag = 'internal scratch']
  %s0 = inlined_call_operand.hbm [shape: f32[8,128], index: 0, kind: input, shape index: {}]
  %s1 = inlined_call_operand.hbm [shape: f32[8,128], index: 1, kind: input, shape index: {}]
  %s2 = inlined_call_operand.hbm [shape: f32[8,128], index: 2, kind: input, shape index: {}]
  %s3 = inlined_call_operand.vmem [shape: f32[8,128], index: 3, kind: input, shape index: {}]
  %s4 = inlined_call_operand.hbm [shape: f32[1,1], index: 4, kind: output, shape index: {}]
  %s5 = sld [smem:[#allocation0]]
  $region38: #{tpu_custom_call.1} parent=0
    _
  %s7 = ssub.s32 1, %s5
  %s8 = scalar_select 0, %s7, %s5
  $region1: #{tpu_custom_call.1} parent=0
    #allocation2 [shape = 'u8[4096]{0}', space=vmem, size = 0x1000, scoped, tag = 'input window, operand 0, single buffered']
    #allocation3 [shape = 's32[1]{0}', space=sflag, size = 0x4, scoped, tag = 'scoped memory for tpu_custom_call.1']
    #allocation4 [shape = 's32[1]{0}', space=sflag, size = 0x4, scoped, tag = 'scoped memory for tpu_custom_call.1']
    #allocation5 [shape = 'u8[4096]{0}', space=vmem, size = 0x1000, scoped, tag = 'input window, operand 1, single buffered']
    #allocation6 [shape = 's32[1]{0}', space=sflag, size = 0x4, scoped, tag = 'scoped memory for tpu_custom_call.1']
    #allocation7 [shape = 'u8[4096]{0}', space=vmem, size = 0x1000, scoped, tag = 'input window, operand 2, single buffered']
    #allocation8 [shape = 'u8[512]{0}', space=smem, size = 0x200, scoped, tag = 'output window, operand 0, single buffered']
    %9 = vsyncpa [#allocation3], 0
    %10 = vsyncpa [#allocation6], 0
    %11 = vsyncpa [#allocation4], 0
    // Predicated region
    $region2: #{tpu_custom_call.1} parent=1 // pred_check
      _
    $region3: #{tpu_custom_call.1} parent=1 // pred_check_branch
      %13 = sbr.rel (0) target = $region5
    $region4: #{tpu_custom_call.1} parent=1 // pred_region
      %s15 = ssub.s32 128, 128
      %16 = vsyncadd [#allocation3], %s15
      %s18 = sshll.u32 [#allocation2], 4
      %s19 = int_to_ptr.vmem [resolvable:$true] %s18
      %21 = dma.hbm_to_vmem [thread:$0]  %s0, 128, %s19, [#allocation3]
    $region5: #{tpu_custom_call.1} parent=1 // pred_fallthru
      _
    // Predicated region
    $region6: #{tpu_custom_call.1} parent=1 // pred_check
      _
    $region7: #{tpu_custom_call.1} parent=1 // pred_check_branch
      %23 = sbr.rel (0) target = $region9
    $region8: #{tpu_custom_call.1} parent=1 // pred_region
      %s25 = ssub.s32 128, 128
      %26 = vsyncadd [#allocation6], %s25
      %s28 = sshll.u32 [#allocation5], 4
      %s29 = int_to_ptr.vmem [resolvable:$true] %s28
      %31 = dma.hbm_to_vmem [thread:$0]  %s1, 128, %s29, [#allocation6]
    $region9: #{tpu_custom_call.1} parent=1 // pred_fallthru
      _
    // Predicated region
    $region10: #{tpu_custom_call.1} parent=1 // pred_check
      _
    $region11: #{tpu_custom_call.1} parent=1 // pred_check_branch
      %33 = sbr.rel (0) target = $region13
    $region12: #{tpu_custom_call.1} parent=1 // pred_region
      %s35 = ssub.s32 128, 128
      %36 = vsyncadd [#allocation6], %s35
      %s38 = sshll.u32 [#allocation7], 4
      %s39 = int_to_ptr.vmem [resolvable:$true] %s38
      %41 = dma.hbm_to_vmem [thread:$0]  %s2, 128, %s39, [#allocation6]
    $region13: #{tpu_custom_call.1} parent=1 // pred_fallthru
      _
    // Predicated region
    $region14: #{tpu_custom_call.1} parent=1 // pred_check
      _
    $region15: #{tpu_custom_call.1} parent=1 // pred_check_branch
      %43 = sbr.rel (0) target = $region17
    $region16: #{tpu_custom_call.1} parent=1 // pred_region
      _
    $region17: #{tpu_custom_call.1} parent=1 // pred_fallthru
      _
    // Predicated region
    $region18: #{tpu_custom_call.1} parent=1 // pred_check
      _
    $region19: #{tpu_custom_call.1} parent=1 // pred_check_branch
      %45 = sbr.rel (0) target = $region21
    $region20: #{tpu_custom_call.1} parent=1 // pred_region
      %46 = dma.done [#allocation3], 128
    $region21: #{tpu_custom_call.1} parent=1 // pred_fallthru
      _
    // Predicated region
    $region22: #{tpu_custom_call.1} parent=1 // pred_check
      _
    $region23: #{tpu_custom_call.1} parent=1 // pred_check_branch
      %48 = sbr.rel (0) target = $region25
    $region24: #{tpu_custom_call.1} parent=1 // pred_region
      %49 = dma.done [#allocation6], 128
    $region25: #{tpu_custom_call.1} parent=1 // pred_fallthru
      _
    // Predicated region
    $region26: #{tpu_custom_call.1} parent=1 // pred_check
      _
    $region27: #{tpu_custom_call.1} parent=1 // pred_check_branch
      %51 = sbr.rel (0) target = $region29
    $region28: #{tpu_custom_call.1} parent=1 // pred_region
      %52 = dma.done [#allocation6], 128
    $region29: #{tpu_custom_call.1} parent=1 // pred_fallthru
      _
    %v53 = vld [vmem:[#allocation2] sm:$0xff]
    %v54 = vmul.f32 %v53, %v53
    %55 = vadd.xlane.f32.xlu0 %v54
    %v56 = vpop.xlane.xlu0 %55
    %v57 = vmax.f32 %v56, 1e-24
    %v58 = vrsqrt.pop %v57
    %v59 = vmul.f32 %v53, %v58
    %v60 = vld [vmem:[#allocation5] sm:$0xff]
    %v61 = vmul.f32 %v60, %v60
    %62 = vadd.xlane.f32.xlu0 %v61
    %v63 = vpop.xlane.xlu0 %62
    %v64 = vmax.f32 %v63, 1e-24
    %v65 = vrsqrt.pop %v64
    %v66 = vmul.f32 %v60, %v65
    %v67 = vld [vmem:[#allocation7] sm:$0xff]
    %v68 = vmul.f32 %v67, %v67
    %69 = vadd.xlane.f32.xlu0 %v68
    %v70 = vpop.xlane.xlu0 %69
    %v71 = vmax.f32 %v70, 1e-24
    %v72 = vrsqrt.pop %v71
    %v73 = vmul.f32 %v67, %v72
    %v74 = vld [vmem:[%s3] sm:$0xff]
    %v75 = vmul.f32 %v74, %v74
    %76 = vadd.xlane.f32.xlu0 %v75
    %v77 = vpop.xlane.xlu0 %76
    %v78 = vmax.f32 %v77, 1e-24
    %v79 = vrsqrt.pop %v78
    %v80 = vmul.f32 %v74, %v79
    %v81 = vmul.f32 %v59, %v73
    %v82 = vrot.slane %v81, 4
    %v83 = vadd.f32 %v81, %v82
    %v84 = vrot.slane %v83, 2
    %v85 = vadd.f32 %v83, %v84
    %v86 = vrot.slane %v85, 1
    %v87 = vadd.f32 %v85, %v86
    %v88 = vmul.f32 %v59, %v59
    %v89 = vrot.slane %v88, 4
    %v90 = vadd.f32 %v88, %v89
    %v91 = vrot.slane %v90, 2
    %v92 = vadd.f32 %v90, %v91
    %v93 = vrot.slane %v92, 1
    %v94 = vadd.f32 %v92, %v93
    %v95 = vmul.f32 %v73, %v73
    %v96 = vrot.slane %v95, 4
    %v97 = vadd.f32 %v95, %v96
    %v98 = vrot.slane %v97, 2
    %v99 = vadd.f32 %v97, %v98
    %v100 = vrot.slane %v99, 1
    %v101 = vadd.f32 %v99, %v100
    %v102 = vadd.f32 %v94, 1e-12
    %v103 = vadd.f32 %v101, 1e-12
    %v104 = vmul.f32 %v102, %v103
    %v105 = vrsqrt.pop %v104
    %v106 = vmul.f32 %v87, %v105
    %vm107 = vcmask 1040384
    %v108 = vsel %vm107, %v106, 0.0
    %109 = vadd.xlane.f32.xlu0 %v108
    %v110 = vpop.xlane.xlu0 %109
    %v111 = vrot.slane %v110, 4
    %v112 = vadd.f32 %v110, %v111
    %v113 = vrot.slane %v112, 2
    %v114 = vadd.f32 %v112, %v113
    %v115 = vrot.slane %v114, 1
    %v116 = vadd.f32 %v114, %v115
    %s117 = vtos %v116
    %v118 = vrcp.pop 32.0
    %s119 = vtos %v118
    %s120 = smul.f32 %s117, %s119
    %s121 = ssub.f32 1.0, %s120
    %v122 = vmul.f32 %v66, %v80
    %v123 = vrot.slane %v122, 4
    %v124 = vadd.f32 %v122, %v123
    %v125 = vrot.slane %v124, 2
    %v126 = vadd.f32 %v124, %v125
    %v127 = vrot.slane %v126, 1
    %v128 = vadd.f32 %v126, %v127
    %v129 = vmul.f32 %v66, %v66
    %v130 = vrot.slane %v129, 4
    %v131 = vadd.f32 %v129, %v130
    %v132 = vrot.slane %v131, 2
    %v133 = vadd.f32 %v131, %v132
    %v134 = vrot.slane %v133, 1
    %v135 = vadd.f32 %v133, %v134
    %v136 = vmul.f32 %v80, %v80
    %v137 = vrot.slane %v136, 4
    %v138 = vadd.f32 %v136, %v137
    %v139 = vrot.slane %v138, 2
    %v140 = vadd.f32 %v138, %v139
    %v141 = vrot.slane %v140, 1
    %v142 = vadd.f32 %v140, %v141
    %v143 = vadd.f32 %v135, 1e-12
    %v144 = vadd.f32 %v142, 1e-12
    %v145 = vmul.f32 %v143, %v144
    %v146 = vrsqrt.pop %v145
    %v147 = vmul.f32 %v128, %v146
    %v148 = vsel %vm107, %v147, 0.0
    %149 = vadd.xlane.f32.xlu0 %v148
    %v150 = vpop.xlane.xlu0 %149
    %v151 = vrot.slane %v150, 4
    %v152 = vadd.f32 %v150, %v151
    %v153 = vrot.slane %v152, 2
    %v154 = vadd.f32 %v152, %v153
    %v155 = vrot.slane %v154, 1
    %v156 = vadd.f32 %v154, %v155
    %s157 = vtos %v156
    %v158 = vrcp.pop 32.0
    %s159 = vtos %v158
    %s160 = smul.f32 %s157, %s159
    %s161 = ssub.f32 1.0, %s160
    %s162 = smul.f32 %s121, 2.0
    %s163 = smul.f32 %s162, %s161
    %s164 = sadd.f32 %s121, %s161
    %s165 = sadd.f32 %s164, 1e-08
    %v166 = vstv %s165
    %v167 = vrcp.pop %v166
    %s168 = vtos %v167
    %s169 = smul.f32 %s163, %s168
    %s170 = scalar_lea.smem [#allocation8], 0
    %171 = sst [smem:[%s170]] %s169
    // Predicated region
    $region30: #{tpu_custom_call.1} parent=1 // pred_check
      _
    $region31: #{tpu_custom_call.1} parent=1 // pred_check_branch
      %173 = sbr.rel (0) target = $region33
    $region32: #{tpu_custom_call.1} parent=1 // pred_region
      %s175 = ssub.s32 16, 16
      %176 = vsyncadd [#allocation4], %s175
      %179 = dma.smem_to_hbm [#allocation8], 16, %s4, [#allocation4]
    $region33: #{tpu_custom_call.1} parent=1 // pred_fallthru
      _
    // Predicated region
    $region34: #{tpu_custom_call.1} parent=1 // pred_check
      _
    $region35: #{tpu_custom_call.1} parent=1 // pred_check_branch
      %181 = sbr.rel (0) target = $region37
    $region36: #{tpu_custom_call.1} parent=1 // pred_region
      %182 = dma.done [#allocation4], 16
    $region37: #{tpu_custom_call.1} parent=1 // pred_fallthru
      _
    %183 = sfence
    %184 = vsyncpa [#allocation3], 1
    %185 = vsyncpa [#allocation6], 1
    %186 = vsyncpa [#allocation4], 1

</llo_original>
